<compile_context>
chip_gen: v7x
topology: tpu7x:2x2x1
jax: 0.10.0
libtpu: 0.0.40
codegen_flags: <defaults>
</compile_context>

<pallas_src>
import functools

import jax
import jax.numpy as jnp
from jax import lax
from jax.experimental import pallas as pl
from jax.experimental.pallas import tpu as pltpu


_TARGET_BLOCK_BYTES = 3 << 20   # ~3 MiB streamed blocks: near HBM roofline, v7x-safe
_FUSED_SLAB_LIMIT = 6 << 20     # single-image slab limit for the fused path (v7x-safe)
_MAX_BT = 16                    # max images batched per grid step (unroll bound)


def _vmem_limit(footprint_bytes):
    """Explicit scoped-VMEM request: footprint + headroom, clamped for v5e/v6e/v7x."""
    return int(min(max(footprint_bytes + (8 << 20), 24 << 20), 48 << 20))


def _pick_hw_tile(hw, c, itemsize, target_bytes):
    """Largest multiple-of-128 divisor of hw whose (C, thw) block is <= target bytes."""
    if hw % 128 != 0:
        return None
    max_elems = max(128, (target_bytes // (c * itemsize)) // 128 * 128)
    best = None
    for t in range(128, min(hw, max_elems) + 1, 128):
        if hw % t == 0:
            best = t
    return best


def _pick_bt(b, slab_bytes, target_bytes):
    """Images per grid step: divisor of B, keeps blocks <= target, leaves >=2 grid steps."""
    for d in range(min(b, _MAX_BT), 0, -1):
        if b % d == 0 and d * slab_bytes <= target_bytes and (b // d >= 2 or b == 1):
            return d
    return 1


# --------------------------------------------------------------------------------------
# Fused single-pass kernel: pool + cSE MLP + sSE conv + gating, x resident in VMEM.
# --------------------------------------------------------------------------------------
def _scse_fused_kernel(x_ref, w1_ref, b1_ref, w2_ref, b2_ref, ws_ref, bs_ref, o_ref,
                       *, inv_hw, bt):
    # x_ref/o_ref: (bt, C, HW)   w1: (mid, C)  b1: (mid, 1)  w2: (C, mid)  b2: (C, 1)
    # ws: (1, C) in x.dtype      bs: (1, 1)
    for i in range(bt):  # static unroll over the images in this block
        x = x_ref[i]                                                      # (C, HW)
        pooled = jnp.sum(x.astype(jnp.float32), axis=-1, keepdims=True) * inv_hw  # (C,1)
        z = jnp.dot(w1_ref[...], pooled, preferred_element_type=jnp.float32) + b1_ref[...]
        z = jnp.maximum(z, 0.0)                                           # ReLU
        s = jnp.dot(w2_ref[...], z, preferred_element_type=jnp.float32) + b2_ref[...]
        cse = jax.nn.sigmoid(s)                                           # (C, 1)
        lin = jnp.dot(ws_ref[...], x, preferred_element_type=jnp.float32) + bs_ref[...]
        sse = jax.nn.sigmoid(lin)                                         # (1, HW)
        # x*cSE + x*sSE == x * (cSE + sSE)
        o_ref[i] = (x * (cse + sse)).astype(o_ref.dtype)


# --------------------------------------------------------------------------------------
# Two-pass fallback, pass 1: tiled partial spatial sums (per batch, per spatial half).
# --------------------------------------------------------------------------------------
def _pool_partial_kernel(x_ref, out_ref, acc_ref, *, nseg):
    # x_ref: (1, C, thw)   out_ref: (1, 1, C, 1) f32   acc_ref: (C, 128) f32 scratch
    j = pl.program_id(2)

    @pl.when(j == 0)
    def _():
        acc_ref[...] = jnp.zeros_like(acc_ref)

    # VPU-only lane-group accumulation; the cross-lane (XLU) reduce happens once below.
    def seg_body(k, carry):
        off = pl.multiple_of(k * 128, 128)
        acc_ref[...] += x_ref[0, :, pl.ds(off, 128)].astype(jnp.float32)
        return carry

    lax.fori_loop(0, nseg, seg_body, 0, unroll=nseg <= 32)

    @pl.when(j == pl.num_programs(2) - 1)
    def _():
        out_ref[0, 0] = jnp.sum(acc_ref[...], axis=-1, keepdims=True)    # (C, 1)


# --------------------------------------------------------------------------------------
# Two-pass fallback, pass 2: fused sSE 1x1 conv + sigmoid + combined gating x*(cSE+sSE).
# --------------------------------------------------------------------------------------
def _scse_apply_kernel(x_ref, sc_ref, ws_ref, bs_ref, o_ref):
    # x_ref: (1, C, thw)  sc_ref: (1, C, 1) f32 cSE gate  ws: (1, C)  bs: (1, 1)
    x = x_ref[0]                                                          # (C, thw)
    sc = sc_ref[0]                                                        # (C, 1)
    lin = jnp.dot(ws_ref[...], x, preferred_element_type=jnp.float32) + bs_ref[...]
    ss = jax.nn.sigmoid(lin)                                              # (1, thw)
    o_ref[0] = (x * (sc + ss)).astype(o_ref.dtype)


def scse_attention(x, w1, b1, w2, b2, ws, bs):
    """x: (B,C,H,W). Weights in PyTorch Conv2d(1x1) layout:
       w1: (mid,C,1,1) b1: (mid,)   w2: (C,mid,1,1) b2: (C,)   ws: (1,C,1,1) bs: (1,)."""
    B, C, H, W = x.shape
    HW = H * W
    mid = w1.shape[0]
    itemsize = jnp.dtype(x.dtype).itemsize
    slab_bytes = C * HW * itemsize
    bytes_x = B * slab_bytes

    x3 = x.reshape(B, C, HW)
    w1_2 = w1.reshape(mid, C).astype(jnp.float32)
    w2_2 = w2.reshape(C, mid).astype(jnp.float32)
    b1_2 = b1.reshape(mid, 1).astype(jnp.float32)
    b2_2 = b2.reshape(C, 1).astype(jnp.float32)
    ws_2 = ws.reshape(1, C).astype(x.dtype)     # streamed MXU operand: match x dtype
    bs_2 = bs.reshape(1, 1).astype(jnp.float32)

    use_fused = slab_bytes <= _FUSED_SLAB_LIMIT
    thw = None
    if not use_fused:
        thw = _pick_hw_tile(HW, C, itemsize, _TARGET_BLOCK_BYTES)
        if thw is None:
            # TODO(synk): HW has no multiple-of-128 divisor; fall back to the fused
            # single-block path (may exceed VMEM for pathological huge shapes; a masked
            # edge tile would be needed to tile such HW).
            use_fused = True

    # ---------------------------- Fused single-pass path ----------------------------
    if use_fused:
        bt = _pick_bt(B, slab_bytes, _TARGET_BLOCK_BYTES)
        block_bytes = bt * slab_bytes
        out3 = pl.pallas_call(
            functools.partial(_scse_fused_kernel, inv_hw=1.0 / HW, bt=bt),
            out_shape=jax.ShapeDtypeStruct((B, C, HW), x.dtype),
            grid_spec=pltpu.PrefetchScalarGridSpec(
                num_scalar_prefetch=0,
                grid=(B // bt,),
                in_specs=[
                    pl.BlockSpec((bt, C, HW), lambda b: (b, 0, 0)),
                    pl.BlockSpec((mid, C), lambda b: (0, 0)),
                    pl.BlockSpec((mid, 1), lambda b: (0, 0)),
                    pl.BlockSpec((C, mid), lambda b: (0, 0)),
                    pl.BlockSpec((C, 1), lambda b: (0, 0)),
                    pl.BlockSpec((1, C), lambda b: (0, 0)),
                    pl.BlockSpec((1, 1), lambda b: (0, 0)),
                ],
                out_specs=pl.BlockSpec((bt, C, HW), lambda b: (b, 0, 0)),
            ),
            compiler_params=pltpu.CompilerParams(
                dimension_semantics=("parallel",),
                vmem_limit_bytes=_vmem_limit(4 * block_bytes),
            ),
            cost_estimate=pl.CostEstimate(
                flops=int(6 * B * C * HW + 4 * B * C * mid),
                transcendentals=int(B * (HW + C)),
                bytes_accessed=int(2 * bytes_x),
            ),
        )(x3, w1_2, b1_2, w2_2, b2_2, ws_2, bs_2)
        return out3.reshape(B, C, H, W)

    # ------------------------- Two-pass path for large slabs -------------------------
    n_hw = HW // thw
    P = 2 if n_hw % 2 == 0 else 1        # parallel spatial split (keeps both TCs busy)
    n_inner = n_hw // P
    nseg = thw // 128
    block_bytes = C * thw * itemsize

    # Pass 1: partial spatial sums, (B, P, C, 1) f32.
    partials = pl.pallas_call(
        functools.partial(_pool_partial_kernel, nseg=nseg),
        out_shape=jax.ShapeDtypeStruct((B, P, C, 1), jnp.float32),
        grid_spec=pltpu.PrefetchScalarGridSpec(
            num_scalar_prefetch=0,
            grid=(B, P, n_inner),
            in_specs=[pl.BlockSpec((1, C, thw),
                                   lambda b, p, j: (b, 0, p * n_inner + j))],
            out_specs=pl.BlockSpec((1, 1, C, 1), lambda b, p, j: (b, p, 0, 0)),
            scratch_shapes=[pltpu.VMEM((C, 128), jnp.float32)],
        ),
        compiler_params=pltpu.CompilerParams(
            dimension_semantics=("parallel", "parallel", "arbitrary"),
            vmem_limit_bytes=_vmem_limit(2 * block_bytes),
        ),
        cost_estimate=pl.CostEstimate(
            flops=int(B * C * HW), transcendentals=0, bytes_accessed=int(bytes_x)),
    )(x3)

    # Tiny squeeze-excite MLP (O(B*C*mid)) in plain JAX: negligible next to the streams.
    hp = jax.lax.Precision.HIGHEST
    pooled = partials.sum(axis=1)[:, :, 0] * (1.0 / HW)                   # (B, C)
    z = jnp.maximum(jnp.dot(pooled, w1_2.T, precision=hp) + b1_2[:, 0], 0.0)
    cse = jax.nn.sigmoid(jnp.dot(z, w2_2.T, precision=hp) + b2_2[:, 0])   # (B, C)
    cse3 = cse[:, :, None].astype(jnp.float32)                            # (B, C, 1)

    # Pass 2: fused sSE conv + sigmoid + gating.
    out3 = pl.pallas_call(
        _scse_apply_kernel,
        out_shape=jax.ShapeDtypeStruct((B, C, HW), x.dtype),
        grid_spec=pltpu.PrefetchScalarGridSpec(
            num_scalar_prefetch=0,
            grid=(B, n_hw),
            in_specs=[
                pl.BlockSpec((1, C, thw), lambda b, j: (b, 0, j)),
                pl.BlockSpec((1, C, 1), lambda b, j: (b, 0, 0)),
                pl.BlockSpec((1, C), lambda b, j: (0, 0)),
                pl.BlockSpec((1, 1), lambda b, j: (0, 0)),
            ],
            out_specs=pl.BlockSpec((1, C, thw), lambda b, j: (b, 0, j)),
        ),
        compiler_params=pltpu.CompilerParams(
            dimension_semantics=("parallel", "parallel"),
            vmem_limit_bytes=_vmem_limit(4 * block_bytes),
        ),
        cost_estimate=pl.CostEstimate(
            flops=int(4 * B * C * HW), transcendentals=int(B * HW),
            bytes_accessed=int(2 * bytes_x)),
    )(x3, cse3, ws_2, bs_2)
    return out3.reshape(B, C, H, W)


def attention_forward(x, name=None, **params):
    """Pallas equivalent of Attention.forward."""
    if name is None:
        return x  # nn.Identity
    if name == "scse":
        return scse_attention(x, **params)
    raise ValueError("Attention {} is not implemented".format(name))


if __name__ == "__main__":
    key = jax.random.PRNGKey(0)
    ks = jax.random.split(key, 7)

    B, C, H, W = 2, 64, 16, 16
    reduction = 16
    mid = C // reduction

    def conv_init(k, shape, fan_in):
        bound = 1.0 / (fan_in ** 0.5)
        return jax.random.uniform(k, shape, jnp.float32, -bound, bound)

    x = jax.random.normal(ks[0], (B, C, H, W), dtype=jnp.float32)
    w1 = conv_init(ks[1], (mid, C, 1, 1), C)    # Conv2d(C, mid, 1)
    b1 = conv_init(ks[2], (mid,), C)
    w2 = conv_init(ks[3], (C, mid, 1, 1), mid)  # Conv2d(mid, C, 1)
    b2 = conv_init(ks[4], (C,), mid)
    ws = conv_init(ks[5], (1, C, 1, 1), C)      # Conv2d(C, 1, 1)
    bs = conv_init(ks[6], (1,), C)

    y = attention_forward(x, name="scse", w1=w1, b1=b1, w2=w2, b2=b2, ws=ws, bs=bs)
    y = jax.block_until_ready(y)

    # Pure-JAX reference (same math as the PyTorch module).
    hp = jax.lax.Precision.HIGHEST
    w1_r, w2_r, ws_r = w1[..., 0, 0], w2[..., 0, 0], ws[..., 0, 0]
    pooled = jnp.mean(x, axis=(2, 3))                                        # (B, C)
    z = jnp.maximum(jnp.einsum("bc,mc->bm", pooled, w1_r, precision=hp) + b1, 0.0)
    cse = jax.nn.sigmoid(jnp.einsum("bm,cm->bc", z, w2_r, precision=hp) + b2)
    cse = cse[:, :, None, None]                                              # (B,C,1,1)
    sse = jax.nn.sigmoid(
        jnp.einsum("bchw,oc->bohw", x, ws_r, precision=hp) + bs[None, :, None, None]
    )                                                                        # (B,1,H,W)
    y_ref = x * cse + x * sse

    assert y.shape == x.shape
    err = float(jnp.max(jnp.abs(y - y_ref)))
    assert jnp.allclose(y, y_ref, atol=5e-3, rtol=5e-3), err

    # Identity path of the Attention wrapper.
    y_id = attention_forward(x, name=None)
    assert jnp.allclose(y_id, x)

    print("KERNEL_OK")
</pallas_src>

<mosaic_0001>
module attributes {stable_mosaic.version = 11 : i64} {
  func.func @_scse_fused_kernel(%arg0: i32, %arg1: memref<1x64x256xf32, #tpu.memory_space<vmem>>, %arg2: memref<4x64xf32, #tpu.memory_space<vmem>>, %arg3: memref<4x1xf32, #tpu.memory_space<vmem>>, %arg4: memref<64x4xf32, #tpu.memory_space<vmem>>, %arg5: memref<64x1xf32, #tpu.memory_space<vmem>>, %arg6: memref<1x64xf32, #tpu.memory_space<vmem>>, %arg7: memref<1x1xf32, #tpu.memory_space<vmem>>, %arg8: memref<1x64x256xf32, #tpu.memory_space<vmem>>) attributes {dimension_semantics = [#tpu.dimension_semantics<parallel>], iteration_bounds = array<i64: 2>, scalar_prefetch = 0 : i64, scratch_operands = 0 : i64, tpu.core_type = #tpu.core_type<tc>, window_params = [{transform_indices = @transform_0, window_bounds = array<i64: 1, 64, 256>}, {pipeline_mode = #tpu.pipeline_mode<synchronous>, transform_indices = @transform_1, window_bounds = array<i64: 4, 64>}, {pipeline_mode = #tpu.pipeline_mode<synchronous>, transform_indices = @transform_2, window_bounds = array<i64: 4, 1>}, {pipeline_mode = #tpu.pipeline_mode<synchronous>, transform_indices = @transform_3, window_bounds = array<i64: 64, 4>}, {pipeline_mode = #tpu.pipeline_mode<synchronous>, transform_indices = @transform_4, window_bounds = array<i64: 64, 1>}, {pipeline_mode = #tpu.pipeline_mode<synchronous>, transform_indices = @transform_5, window_bounds = array<i64: 1, 64>}, {pipeline_mode = #tpu.pipeline_mode<synchronous>, transform_indices = @transform_6, window_bounds = array<i64: 1, 1>}, {transform_indices = @transform_7, window_bounds = array<i64: 1, 64, 256>}]} {
    %c0 = arith.constant 0 : index
    %c0_0 = arith.constant 0 : index
    %c0_1 = arith.constant 0 : index
    %0 = vector.load %arg1[%c0, %c0_0, %c0_1] : memref<1x64x256xf32, #tpu.memory_space<vmem>>, vector<1x64x256xf32>
    %1 = vector.shape_cast %0 : vector<1x64x256xf32> to vector<64x256xf32>
    %cst = arith.constant dense<0.000000e+00> : vector<64xf32>
    %2 = vector.multi_reduction <add>, %1, %cst [1] : vector<64x256xf32> to vector<64xf32>
    %3 = vector.shape_cast %2 : vector<64xf32> to vector<64x1xf32>
    %cst_2 = arith.constant 3.906250e-03 : f32
    %4 = vector.broadcast %cst_2 : f32 to vector<64x1xf32>
    %5 = arith.mulf %3, %4 : vector<64x1xf32>
    %c0_3 = arith.constant 0 : index
    %c0_4 = arith.constant 0 : index
    %6 = vector.load %arg2[%c0_3, %c0_4] : memref<4x64xf32, #tpu.memory_space<vmem>>, vector<4x64xf32>
    %cst_5 = arith.constant dense<0.000000e+00> : vector<4x1xf32>
    %7 = tpu.matmul %6, %5, %cst_5 {dimension_numbers = #tpu.dot_dimension_numbers<[1], [0], [0], [1], [0, 0, 1, 1], [], []>} : vector<4x64xf32>, vector<64x1xf32>, vector<4x1xf32> -> vector<4x1xf32>
    %c0_6 = arith.constant 0 : index
    %c0_7 = arith.constant 0 : index
    %8 = vector.load %arg3[%c0_6, %c0_7] : memref<4x1xf32, #tpu.memory_space<vmem>>, vector<4x1xf32>
    %9 = arith.addf %7, %8 : vector<4x1xf32>
    %cst_8 = arith.constant 0.000000e+00 : f32
    %10 = vector.broadcast %cst_8 : f32 to vector<4x1xf32>
    %11 = arith.maximumf %9, %10 : vector<4x1xf32>
    %c0_9 = arith.constant 0 : index
    %c0_10 = arith.constant 0 : index
    %12 = vector.load %arg4[%c0_9, %c0_10] : memref<64x4xf32, #tpu.memory_space<vmem>>, vector<64x4xf32>
    %cst_11 = arith.constant dense<0.000000e+00> : vector<64x1xf32>
    %13 = tpu.matmul %12, %11, %cst_11 {dimension_numbers = #tpu.dot_dimension_numbers<[1], [0], [0], [1], [0, 0, 1, 1], [], []>} : vector<64x4xf32>, vector<4x1xf32>, vector<64x1xf32> -> vector<64x1xf32>
    %c0_12 = arith.constant 0 : index
    %c0_13 = arith.constant 0 : index
    %14 = vector.load %arg5[%c0_12, %c0_13] : memref<64x1xf32, #tpu.memory_space<vmem>>, vector<64x1xf32>
    %15 = arith.addf %13, %14 : vector<64x1xf32>
    %16 = arith.negf %15 : vector<64x1xf32>
    %17 = math.exp %16 : vector<64x1xf32>
    %cst_14 = arith.constant 1.000000e+00 : f32
    %18 = vector.broadcast %cst_14 : f32 to vector<64x1xf32>
    %19 = arith.addf %18, %17 : vector<64x1xf32>
    %20 = arith.divf %18, %19 : vector<64x1xf32>
    %c0_15 = arith.constant 0 : index
    %c0_16 = arith.constant 0 : index
    %21 = vector.load %arg6[%c0_15, %c0_16] : memref<1x64xf32, #tpu.memory_space<vmem>>, vector<1x64xf32>
    %cst_17 = arith.constant dense<0.000000e+00> : vector<1x256xf32>
    %22 = tpu.matmul %21, %1, %cst_17 {dimension_numbers = #tpu.dot_dimension_numbers<[1], [0], [0], [1], [0, 0, 1, 1], [], []>} : vector<1x64xf32>, vector<64x256xf32>, vector<1x256xf32> -> vector<1x256xf32>
    %c0_18 = arith.constant 0 : index
    %c0_19 = arith.constant 0 : index
    %23 = vector.load %arg7[%c0_18, %c0_19] : memref<1x1xf32, #tpu.memory_space<vmem>>, vector<1x1xf32>
    %24 = vector.broadcast %23 : vector<1x1xf32> to vector<1x256xf32>
    %25 = arith.addf %22, %24 : vector<1x256xf32>
    %26 = arith.negf %25 : vector<1x256xf32>
    %27 = math.exp %26 : vector<1x256xf32>
    %cst_20 = arith.constant 1.000000e+00 : f32
    %28 = vector.broadcast %cst_20 : f32 to vector<1x256xf32>
    %29 = arith.addf %28, %27 : vector<1x256xf32>
    %30 = arith.divf %28, %29 : vector<1x256xf32>
    %31 = vector.broadcast %20 : vector<64x1xf32> to vector<64x256xf32>
    %32 = vector.broadcast %30 : vector<1x256xf32> to vector<64x256xf32>
    %33 = arith.addf %31, %32 : vector<64x256xf32>
    %34 = arith.mulf %1, %33 : vector<64x256xf32>
    %c0_21 = arith.constant 0 : index
    %c0_22 = arith.constant 0 : index
    %c0_23 = arith.constant 0 : index
    %35 = vector.load %arg8[%c0_21, %c0_22, %c0_23] : memref<1x64x256xf32, #tpu.memory_space<vmem>>, vector<1x64x256xf32>
    %36 = vector.shape_cast %35 : vector<1x64x256xf32> to vector<64x256xf32>
    %37 = vector.shape_cast %34 : vector<64x256xf32> to vector<1x64x256xf32>
    tpu.vector_store %arg8[%c0_21, %c0_22, %c0_23], %37 {strides = array<i32>} : memref<1x64x256xf32, #tpu.memory_space<vmem>>, vector<1x64x256xf32>,
    return
  }
  func.func @transform_0(%arg0: i32) -> (i32, i32, i32) {
    %c0_i32 = arith.constant 0 : i32
    %c0_i32_0 = arith.constant 0 : i32
    %c0_i32_1 = arith.constant 0 : i32
    return %arg0, %c0_i32, %c0_i32_0 : i32, i32, i32
  }
  func.func @transform_1(%arg0: i32) -> (i32, i32) {
    %c0_i32 = arith.constant 0 : i32
    %c0_i32_0 = arith.constant 0 : i32
    %c0_i32_1 = arith.constant 0 : i32
    return %c0_i32, %c0_i32_0 : i32, i32
  }
  func.func @transform_2(%arg0: i32) -> (i32, i32) {
    %c0_i32 = arith.constant 0 : i32
    %c0_i32_0 = arith.constant 0 : i32
    %c0_i32_1 = arith.constant 0 : i32
    return %c0_i32, %c0_i32_0 : i32, i32
  }
  func.func @transform_3(%arg0: i32) -> (i32, i32) {
    %c0_i32 = arith.constant 0 : i32
    %c0_i32_0 = arith.constant 0 : i32
    %c0_i32_1 = arith.constant 0 : i32
    return %c0_i32, %c0_i32_0 : i32, i32
  }
  func.func @transform_4(%arg0: i32) -> (i32, i32) {
    %c0_i32 = arith.constant 0 : i32
    %c0_i32_0 = arith.constant 0 : i32
    %c0_i32_1 = arith.constant 0 : i32
    return %c0_i32, %c0_i32_0 : i32, i32
  }
  func.func @transform_5(%arg0: i32) -> (i32, i32) {
    %c0_i32 = arith.constant 0 : i32
    %c0_i32_0 = arith.constant 0 : i32
    %c0_i32_1 = arith.constant 0 : i32
    return %c0_i32, %c0_i32_0 : i32, i32
  }
  func.func @transform_6(%arg0: i32) -> (i32, i32) {
    %c0_i32 = arith.constant 0 : i32
    %c0_i32_0 = arith.constant 0 : i32
    %c0_i32_1 = arith.constant 0 : i32
    return %c0_i32, %c0_i32_0 : i32, i32
  }
  func.func @transform_7(%arg0: i32) -> (i32, i32, i32) {
    %c0_i32 = arith.constant 0 : i32
    %c0_i32_0 = arith.constant 0 : i32
    %c0_i32_1 = arith.constant 0 : i32
    return %arg0, %c0_i32, %c0_i32_0 : i32, i32, i32
  }
}

</mosaic_0001>

<llo_original>
// kernel: tpu_custom_call.1
$region0: #{tpu_custom_call.1}
  #allocation0 [shape = 'u32[]', space=smem, size = 0x4, offset = 0x4, fixed_abs, tag = 'smem constant byte address 0x4 - core index']
  #allocation1 [shape = 'u32[144,128]{1,0:T(1,128)}', space=vmem, size = 0x12000, scoped, tag = 'internal scratch']
  #allocation2 [shape = 'f32[1,1]{1,0:T(1,128)S(1)}', space=vmem, size = 0x200, scoped, tag = 'scoped memory for tpu_custom_call.1']
  %s0 = inlined_call_operand.hbm [shape: f32[2,64,256], index: 0, kind: input, shape index: {}]
  %s1 = inlined_call_operand.vmem [shape: f32[4,64], index: 1, kind: input, shape index: {}]
  %s2 = inlined_call_operand.vmem [shape: f32[4,1], index: 2, kind: input, shape index: {}]
  %s3 = inlined_call_operand.vmem [shape: f32[64,4], index: 3, kind: input, shape index: {}]
  %s4 = inlined_call_operand.vmem [shape: f32[64,1], index: 4, kind: input, shape index: {}]
  %s5 = inlined_call_operand.vmem [shape: f32[1,64], index: 5, kind: input, shape index: {}]
  %s6 = inlined_call_operand.<no memory space> [shape: f32[1,1], index: 6, kind: input, shape index: {}]
  %s7 = inlined_call_operand.hbm [shape: f32[2,64,256], index: 7, kind: output, shape index: {}]
  %s8 = sld [smem:[#allocation0]]
  $region65: #{tpu_custom_call.1} parent=0
    _
  %s10 = ssub.s32 1, %s8
  %s11 = scalar_select 0, %s10, %s8
  %v12 = vstv %s6
  %13 = vst [vmem:[#allocation2] sm:$0x1] %v12
  $region1: #{tpu_custom_call.1} parent=0
    #allocation3 [shape = 'u8[131072]{0}', space=vmem, size = 0x20000, scoped, tag = 'input window, operand 0']
    #allocation4 [shape = 's32[2]{0}', space=sflag, size = 0x8, scoped, tag = 'scoped memory for tpu_custom_call.1']
    #allocation5 [shape = 's32[2]{0}', space=sflag, size = 0x8, scoped, tag = 'scoped memory for tpu_custom_call.1']
    #allocation6 [shape = 'u8[131072]{0}', space=vmem, size = 0x20000, scoped, tag = 'output window, operand 0']
    %14 = vsyncpa [#allocation4], 0
    %s15 = scalar_lea.sflag [#allocation4], 1
    %16 = vsyncpa %s15, 0
    %17 = vsyncpa [#allocation5], 0
    %s18 = scalar_lea.sflag [#allocation5], 1
    %19 = vsyncpa %s18, 0
    loop: start=0, step=1, limit=4
    $region2: #{tpu_custom_call.1} parent=1 // loop_pre_header
      _
    $region3: #{tpu_custom_call.1} parent=1 // loop_header
      %s21 = sphi 0, %s25
      %p22 = scmp.ge.s32.totalorder %s21, 4
      %s31 = sphi 0, %s33
      %s34 = sphi 0, %s31
      %s35 = sphi 0, %s34
      %s51 = sphi 0, %s35
      %s55 = sphi 0, %s55
      %s57 = sphi 0, %s55
      %s58 = sphi 0, %s57
      %s72 = sphi 0, %s58
      %s76 = sphi 0, %s76
      %s78 = sphi 0, %s76
      %s79 = sphi 0, %s78
      %s93 = sphi 0, %s79
      %s97 = sphi 0, %s97
      %s99 = sphi 0, %s97
      %s100 = sphi 0, %s99
      %s114 = sphi 0, %s100
      %s118 = sphi 0, %s118
      %s120 = sphi 0, %s118
      %s121 = sphi 0, %s120
      %s135 = sphi 0, %s121
      %s139 = sphi 0, %s139
      %s141 = sphi 0, %s139
      %s142 = sphi 0, %s141
      %s156 = sphi 0, %s142
      %s160 = sphi 0, %s160
      %s162 = sphi 0, %s160
      %s163 = sphi 0, %s162
      %s177 = sphi 0, %s163
      %s183 = sphi 0, %s185
      %s186 = sphi 0, %s183
      %s187 = sphi 0, %s186
      %s203 = sphi 0, %s187
    $region4: #{tpu_custom_call.1} parent=1 // loop_header_branch
      %24 = sbr.rel (%p22) target = $region8
    $region5: #{tpu_custom_call.1} parent=1 // loop_body
      %s26 = ssub.s32 %s21, 1
      %s27 = ssub.s32 %s21, 2
      %s28 = sadd.s32 %s21, 1
      %s29 = ssub.s32 %s21, %s28
      %p30 = scmp.eq.s32.totalorder %s29, 0
      %s32 = sadd.s32 %s31, 1
      %s33 = scalar_select %p30, %s31, %s32
      %p36 = pneg %p30
      %p37 = scmp.eq.s32.totalorder %s21, 1
      %p38 = por %p36, %p37
      %p39 = scmp.ne.s32.totalorder %s31, %s34
      %p40 = scmp.eq.s32.totalorder %s21, 0
      %p41 = por %p39, %p40
      %p42 = scmp.ne.s32.totalorder %s31, %s34
      %p43 = scmp.eq.s32.totalorder %s26, 1
      %p44 = por %p42, %p43
      %p45 = scmp.ne.s32.totalorder %s34, %s35
      %p46 = scmp.eq.s32.totalorder %s26, 0
      %p47 = por %p45, %p46
      %p48 = scmp.ne.s32.totalorder %s34, %s35
      %p49 = scmp.eq.s32.totalorder %s27, 1
      %p50 = por %p48, %p49
      %p52 = scmp.ne.s32.totalorder %s35, %s51
      %p53 = scmp.eq.s32.totalorder %s27, 0
      %p54 = por %p52, %p53
      %s56 = sadd.s32 %s55, 1
      %p59 = scmp.eq.s32.totalorder %s21, 1
      %p60 = scmp.ne.s32.totalorder %s55, %s57
      %p61 = scmp.eq.s32.totalorder %s21, 0
      %p62 = por %p60, %p61
      %p63 = scmp.ne.s32.totalorder %s55, %s57
      %p64 = scmp.eq.s32.totalorder %s26, 1
      %p65 = por %p63, %p64
      %p66 = scmp.ne.s32.totalorder %s57, %s58
      %p67 = scmp.eq.s32.totalorder %s26, 0
      %p68 = por %p66, %p67
      %p69 = scmp.ne.s32.totalorder %s57, %s58
      %p70 = scmp.eq.s32.totalorder %s27, 1
      %p71 = por %p69, %p70
      %p73 = scmp.ne.s32.totalorder %s58, %s72
      %p74 = scmp.eq.s32.totalorder %s27, 0
      %p75 = por %p73, %p74
      %s77 = sadd.s32 %s76, 1
      %p80 = scmp.eq.s32.totalorder %s21, 1
      %p81 = scmp.ne.s32.totalorder %s76, %s78
      %p82 = scmp.eq.s32.totalorder %s21, 0
      %p83 = por %p81, %p82
      %p84 = scmp.ne.s32.totalorder %s76, %s78
      %p85 = scmp.eq.s32.totalorder %s26, 1
      %p86 = por %p84, %p85
      %p87 = scmp.ne.s32.totalorder %s78, %s79
      %p88 = scmp.eq.s32.totalorder %s26, 0
      %p89 = por %p87, %p88
      %p90 = scmp.ne.s32.totalorder %s78, %s79
      %p91 = scmp.eq.s32.totalorder %s27, 1
      %p92 = por %p90, %p91
      %p94 = scmp.ne.s32.totalorder %s79, %s93
      %p95 = scmp.eq.s32.totalorder %s27, 0
      %p96 = por %p94, %p95
      %s98 = sadd.s32 %s97, 1
      %p101 = scmp.eq.s32.totalorder %s21, 1
      %p102 = scmp.ne.s32.totalorder %s97, %s99
      %p103 = scmp.eq.s32.totalorder %s21, 0
      %p104 = por %p102, %p103
      %p105 = scmp.ne.s32.totalorder %s97, %s99
      %p106 = scmp.eq.s32.totalorder %s26, 1
      %p107 = por %p105, %p106
      %p108 = scmp.ne.s32.totalorder %s99, %s100
      %p109 = scmp.eq.s32.totalorder %s26, 0
      %p110 = por %p108, %p109
      %p111 = scmp.ne.s32.totalorder %s99, %s100
      %p112 = scmp.eq.s32.totalorder %s27, 1
      %p113 = por %p111, %p112
      %p115 = scmp.ne.s32.totalorder %s100, %s114
      %p116 = scmp.eq.s32.totalorder %s27, 0
      %p117 = por %p115, %p116
      %s119 = sadd.s32 %s118, 1
      %p122 = scmp.eq.s32.totalorder %s21, 1
      %p123 = scmp.ne.s32.totalorder %s118, %s120
      %p124 = scmp.eq.s32.totalorder %s21, 0
      %p125 = por %p123, %p124
      %p126 = scmp.ne.s32.totalorder %s118, %s120
      %p127 = scmp.eq.s32.totalorder %s26, 1
      %p128 = por %p126, %p127
      %p129 = scmp.ne.s32.totalorder %s120, %s121
      %p130 = scmp.eq.s32.totalorder %s26, 0
      %p131 = por %p129, %p130
      %p132 = scmp.ne.s32.totalorder %s120, %s121
      %p133 = scmp.eq.s32.totalorder %s27, 1
      %p134 = por %p132, %p133
      %p136 = scmp.ne.s32.totalorder %s121, %s135
      %p137 = scmp.eq.s32.totalorder %s27, 0
      %p138 = por %p136, %p137
      %s140 = sadd.s32 %s139, 1
      %p143 = scmp.eq.s32.totalorder %s21, 1
      %p144 = scmp.ne.s32.totalorder %s139, %s141
      %p145 = scmp.eq.s32.totalorder %s21, 0
      %p146 = por %p144, %p145
      %p147 = scmp.ne.s32.totalorder %s139, %s141
      %p148 = scmp.eq.s32.totalorder %s26, 1
      %p149 = por %p147, %p148
      %p150 = scmp.ne.s32.totalorder %s141, %s142
      %p151 = scmp.eq.s32.totalorder %s26, 0
      %p152 = por %p150, %p151
      %p153 = scmp.ne.s32.totalorder %s141, %s142
      %p154 = scmp.eq.s32.totalorder %s27, 1
      %p155 = por %p153, %p154
      %p157 = scmp.ne.s32.totalorder %s142, %s156
      %p158 = scmp.eq.s32.totalorder %s27, 0
      %p159 = por %p157, %p158
      %s161 = sadd.s32 %s160, 1
      %p164 = scmp.eq.s32.totalorder %s21, 1
      %p165 = scmp.ne.s32.totalorder %s160, %s162
      %p166 = scmp.eq.s32.totalorder %s21, 0
      %p167 = por %p165, %p166
      %p168 = scmp.ne.s32.totalorder %s160, %s162
      %p169 = scmp.eq.s32.totalorder %s26, 1
      %p170 = por %p168, %p169
      %p171 = scmp.ne.s32.totalorder %s162, %s163
      %p172 = scmp.eq.s32.totalorder %s26, 0
      %p173 = por %p171, %p172
      %p174 = scmp.ne.s32.totalorder %s162, %s163
      %p175 = scmp.eq.s32.totalorder %s27, 1
      %p176 = por %p174, %p175
      %p178 = scmp.ne.s32.totalorder %s163, %s177
      %p179 = scmp.eq.s32.totalorder %s27, 0
      %p180 = por %p178, %p179
      %s181 = ssub.s32 %s21, %s28
      %p182 = scmp.eq.s32.totalorder %s181, 0
      %s184 = sadd.s32 %s183, 1
      %s185 = scalar_select %p182, %s183, %s184
      %p188 = pneg %p182
      %p189 = scmp.eq.s32.totalorder %s21, 1
      %p190 = por %p188, %p189
      %p191 = scmp.ne.s32.totalorder %s183, %s186
      %p192 = scmp.eq.s32.totalorder %s21, 0
      %p193 = por %p191, %p192
      %p194 = scmp.ne.s32.totalorder %s183, %s186
      %p195 = scmp.eq.s32.totalorder %s26, 1
      %p196 = por %p194, %p195
      %p197 = scmp.ne.s32.totalorder %s186, %s187
      %p198 = scmp.eq.s32.totalorder %s26, 0
      %p199 = por %p197, %p198
      %p200 = scmp.ne.s32.totalorder %s186, %s187
      %p201 = scmp.eq.s32.totalorder %s27, 1
      %p202 = por %p200, %p201
      %p204 = scmp.ne.s32.totalorder %s187, %s203
      %p205 = scmp.eq.s32.totalorder %s27, 0
      %p206 = por %p204, %p205
      %p207 = scmp.le.s32.totalorder 1, %s21
      %p208 = scmp.lt.s32.totalorder %s21, 3
      %p209 = pnand %p207, %p208
      %p210 = pneg %p209
      // Predicated region
      $region9: #{tpu_custom_call.1} parent=5 // pred_check
        _
      $region10: #{tpu_custom_call.1} parent=5 // pred_check_branch
        %212 = sbr.rel (%p209) target = $region12
      $region11: #{tpu_custom_call.1} parent=5 // pred_region
        %s213 = ssub.s32 %s21, 1
        // Predicated region
        $region13: #{tpu_custom_call.1} parent=11 // pred_check
          %p214 = pneg %p68
        $region14: #{tpu_custom_call.1} parent=11 // pred_check_branch
          %216 = sbr.rel (%p214) target = $region16
        $region15: #{tpu_custom_call.1} parent=11 // pred_region
          _
        $region16: #{tpu_custom_call.1} parent=11 // pred_fallthru
          _
        // Predicated region
        $region17: #{tpu_custom_call.1} parent=11 // pred_check
          %p217 = pneg %p89
        $region18: #{tpu_custom_call.1} parent=11 // pred_check_branch
          %219 = sbr.rel (%p217) target = $region20
        $region19: #{tpu_custom_call.1} parent=11 // pred_region
          _
        $region20: #{tpu_custom_call.1} parent=11 // pred_fallthru
          _
        // Predicated region
        $region21: #{tpu_custom_call.1} parent=11 // pred_check
          %p220 = pneg %p110
        $region22: #{tpu_custom_call.1} parent=11 // pred_check_branch
          %222 = sbr.rel (%p220) target = $region24
        $region23: #{tpu_custom_call.1} parent=11 // pred_region
          _
        $region24: #{tpu_custom_call.1} parent=11 // pred_fallthru
          _
        // Predicated region
        $region25: #{tpu_custom_call.1} parent=11 // pred_check
          %p223 = pneg %p131
        $region26: #{tpu_custom_call.1} parent=11 // pred_check_branch
          %225 = sbr.rel (%p223) target = $region28
        $region27: #{tpu_custom_call.1} parent=11 // pred_region
          _
        $region28: #{tpu_custom_call.1} parent=11 // pred_fallthru
          _
        // Predicated region
        $region29: #{tpu_custom_call.1} parent=11 // pred_check
          %p226 = pneg %p152
        $region30: #{tpu_custom_call.1} parent=11 // pred_check_branch
          %228 = sbr.rel (%p226) target = $region32
        $region31: #{tpu_custom_call.1} parent=11 // pred_region
          _
        $region32: #{tpu_custom_call.1} parent=11 // pred_fallthru
          _
        // Predicated region
        $region33: #{tpu_custom_call.1} parent=11 // pred_check
          %p229 = pneg %p173
        $region34: #{tpu_custom_call.1} parent=11 // pred_check_branch
          %231 = sbr.rel (%p229) target = $region36
        $region35: #{tpu_custom_call.1} parent=11 // pred_region
          _
        $region36: #{tpu_custom_call.1} parent=11 // pred_fallthru
          _
      $region12: #{tpu_custom_call.1} parent=5 // pred_fallthru
        _
      %p232 = scmp.lt.s32.totalorder %s21, 2
      // Predicated region
      $region37: #{tpu_custom_call.1} parent=5 // pred_check
        %p233 = pneg %p232
      $region38: #{tpu_custom_call.1} parent=5 // pred_check_branch
        %235 = sbr.rel (%p233) target = $region40
      $region39: #{tpu_custom_call.1} parent=5 // pred_region
        // Predicated region
        $region41: #{tpu_custom_call.1} parent=39 // pred_check
          %p236 = pneg %p41
        $region42: #{tpu_custom_call.1} parent=39 // pred_check_branch
          %238 = sbr.rel (%p236) target = $region44
        $region43: #{tpu_custom_call.1} parent=39 // pred_region
          %s239 = sand.u32 %s31, 1
          %s240 = scalar_lea.sflag [#allocation4], %s239
          %s241 = sand.u32 %s31, 1
          %s242 = smul.addr %s241, 128
          %s243 = scalar_lea.vmem [#allocation3], %s242
          %s245 = ssub.s32 2048, 2048
          %246 = vsyncadd %s240, %s245
          %s247 = smul.addr %s21, 16
          %s248 = smul.addr %s247, 128
          %s249 = scalar_lea.hbm %s0, %s248
          %s250 = sshll.u32 %s243, 4
          %s251 = int_to_ptr.vmem [resolvable:$true] %s250
          %256 = dma.hbm_to_vmem [thread:$0]  %s249, 2048, %s251, %s240, 256, 256, 16
        $region44: #{tpu_custom_call.1} parent=39 // pred_fallthru
          _
      $region40: #{tpu_custom_call.1} parent=5 // pred_fallthru
        _
      %p257 = scmp.le.s32.totalorder 1, %s21
      %p258 = scmp.lt.s32.totalorder %s21, 3
      %p259 = pnand %p257, %p258
      %p260 = pneg %p259
      // Predicated region
      $region45: #{tpu_custom_call.1} parent=5 // pred_check
        _
      $region46: #{tpu_custom_call.1} parent=5 // pred_check_branch
        %262 = sbr.rel (%p259) target = $region48
      $region47: #{tpu_custom_call.1} parent=5 // pred_region
        %s263 = ssub.s32 %s21, 1
        %s264 = sand.u32 %s34, 1
        %s265 = scalar_lea.sflag [#allocation4], %s264
        %s266 = sand.u32 %s34, 1
        %s267 = smul.addr %s266, 128
        %s268 = scalar_lea.vmem [#allocation3], %s267
        // Predicated region
        $region49: #{tpu_custom_call.1} parent=47 // pred_check
          %p269 = pneg %p47
        $region50: #{tpu_custom_call.1} parent=47 // pred_check_branch
          %271 = sbr.rel (%p269) target = $region52
        $region51: #{tpu_custom_call.1} parent=47 // pred_region
          %272 = dma.done %s265, 2048
        $region52: #{tpu_custom_call.1} parent=47 // pred_fallthru
          _
        %s273 = sand.u32 %s34, 1
        %s274 = scalar_lea.sflag [#allocation4], %s273
        %s275 = sand.u32 %s34, 1
        %s276 = smul.addr %s275, 128
        %s277 = scalar_lea.vmem [#allocation3], %s276
        %p278 = pneg %p47
        %p279 = pneg %p44
        %p280 = pneg %p68
        %p281 = pneg %p65
        %p282 = pneg %p89
        %p283 = pneg %p86
        %p284 = pneg %p110
        %p285 = pneg %p107
        %p286 = pneg %p131
        %p287 = pneg %p128
        %p288 = pneg %p152
        %p289 = pneg %p149
        %p290 = pneg %p173
        %p291 = pneg %p170
        %p292 = pneg %p199
        %p293 = pneg %p196
        %s294 = sand.u32 %s186, 1
        %s295 = scalar_lea.sflag [#allocation5], %s294
        %s296 = sand.u32 %s186, 1
        %s297 = smul.addr %s296, 128
        %s298 = scalar_lea.vmem [#allocation6], %s297
        %v299 = vld [vmem:[%s268] sm:$0xff]
        %v300 = vld [vmem:[%s268 + $0x8] sm:$0xff]
        %v301 = vld [vmem:[%s268 + $0x10] sm:$0xff]
        %v302 = vld [vmem:[%s268 + $0x18] sm:$0xff]
        %v303 = vld [vmem:[%s268 + $0x20] sm:$0xff]
        %v304 = vld [vmem:[%s268 + $0x28] sm:$0xff]
        %v305 = vld [vmem:[%s268 + $0x30] sm:$0xff]
        %v306 = vld [vmem:[%s268 + $0x38] sm:$0xff]
        %v307 = vld [vmem:[%s268 + $0x40] sm:$0xff]
        %v308 = vld [vmem:[%s268 + $0x48] sm:$0xff]
        %v309 = vld [vmem:[%s268 + $0x50] sm:$0xff]
        %v310 = vld [vmem:[%s268 + $0x58] sm:$0xff]
        %v311 = vld [vmem:[%s268 + $0x60] sm:$0xff]
        %v312 = vld [vmem:[%s268 + $0x68] sm:$0xff]
        %v313 = vld [vmem:[%s268 + $0x70] sm:$0xff]
        %v314 = vld [vmem:[%s268 + $0x78] sm:$0xff]
        %v315 = vadd.f32 %v299, %v300
        %316 = vadd.xlane.f32.xlu0 %v315
        %v317 = vpop.xlane.xlu0 %316
        %v318 = vadd.f32 %v301, %v302
        %319 = vadd.xlane.f32.xlu0 %v318
        %v320 = vpop.xlane.xlu0 %319
        %v321 = vadd.f32 %v303, %v304
        %322 = vadd.xlane.f32.xlu0 %v321
        %v323 = vpop.xlane.xlu0 %322
        %v324 = vadd.f32 %v305, %v306
        %325 = vadd.xlane.f32.xlu0 %v324
        %v326 = vpop.xlane.xlu0 %325
        %v327 = vadd.f32 %v307, %v308
        %328 = vadd.xlane.f32.xlu0 %v327
        %v329 = vpop.xlane.xlu0 %328
        %v330 = vadd.f32 %v309, %v310
        %331 = vadd.xlane.f32.xlu0 %v330
        %v332 = vpop.xlane.xlu0 %331
        %v333 = vadd.f32 %v311, %v312
        %334 = vadd.xlane.f32.xlu0 %v333
        %v335 = vpop.xlane.xlu0 %334
        %v336 = vadd.f32 %v313, %v314
        %337 = vadd.xlane.f32.xlu0 %v336
        %v338 = vpop.xlane.xlu0 %337
        %v339 = vmul.f32 %v317, 0.00390625
        %v340 = vmul.f32 %v320, 0.00390625
        %v341 = vmul.f32 %v323, 0.00390625
        %v342 = vmul.f32 %v326, 0.00390625
        %v343 = vmul.f32 %v329, 0.00390625
        %v344 = vmul.f32 %v332, 0.00390625
        %v345 = vmul.f32 %v335, 0.00390625
        %v346 = vmul.f32 %v338, 0.00390625
        %v347 = vld [vmem:[%s1] sm:$0xf]
        %v348 = vld [vmem:[%s2] sm:$0xf]
        %vm349 = vcmask 523264
        %v351 = vsel %vm349, %v347, 0
        %353 = vmatprep.subr.mxu0 0.0
        %354 = vmatpush1.msra.mxu0 %v339
        %355 = vmatprep.subr.mxu0 0.0
        %356 = vmatpush1.msra.mxu0 %v340
        %357 = vmatprep.subr.mxu0 0.0
        %358 = vmatpush1.msra.mxu0 %v341
        %359 = vmatprep.subr.mxu0 0.0
        %360 = vmatpush1.msra.mxu0 %v342
        %361 = vmatprep.subr.mxu0 0.0
        %362 = vmatpush1.msra.mxu0 %v343
        %363 = vmatprep.subr.mxu0 0.0
        %364 = vmatpush1.msra.mxu0 %v344
        %365 = vmatprep.subr.mxu0 0.0
        %366 = vmatpush1.msra.mxu0 %v345
        %367 = vmatprep.subr.mxu0 0.0
        %368 = vmatpush1.msra.mxu0 %v346
        %369 = vmatprep.subr.mxu0 0.0
        %370 = vmatpush1.msra.mxu0 0.0
        %371 = vmatprep.subr.mxu0 0.0
        %372 = vmatpush1.msra.mxu0 0.0
        %373 = vmatprep.subr.mxu0 0.0
        %374 = vmatpush1.msra.mxu0 0.0
        %375 = vmatprep.subr.mxu0 0.0
        %376 = vmatpush1.msra.mxu0 0.0
        %377 = vmatprep.subr.mxu0 0.0
        %378 = vmatpush1.msra.mxu0 0.0
        %379 = vmatprep.subr.mxu0 0.0
        %380 = vmatpush1.msra.mxu0 0.0
        %381 = vmatprep.subr.mxu0 0.0
        %382 = vmatpush1.msra.mxu0 0.0
        %383 = vmatprep.subr.mxu0 0.0
        %384 = vmatpush1.msra.mxu0 0.0
        %385 = vmatprep.subr.mxu0 0.0
        %386 = vmatpush1.msra.mxu0 0.0
        %387 = vmatprep.subr.mxu0 0.0
        %388 = vmatpush1.msra.mxu0 0.0
        %389 = vmatprep.subr.mxu0 0.0
        %390 = vmatpush1.msra.mxu0 0.0
        %391 = vmatprep.subr.mxu0 0.0
        %392 = vmatpush1.msra.mxu0 0.0
        %393 = vmatprep.subr.mxu0 0.0
        %394 = vmatpush1.msra.mxu0 0.0
        %395 = vmatprep.subr.mxu0 0.0
        %396 = vmatpush1.msra.mxu0 0.0
        %397 = vmatprep.subr.mxu0 0.0
        %398 = vmatpush1.msra.mxu0 0.0
        %399 = vmatprep.subr.mxu0 0.0
        %400 = vmatpush1.msra.mxu0 0.0
        %401 = vmatprep.subr.mxu0 0.0
        %402 = vmatpush1.msra.mxu0 0.0
        %403 = vmatprep.subr.mxu0 0.0
        %404 = vmatpush1.msra.mxu0 0.0
        %405 = vmatprep.subr.mxu0 0.0
        %406 = vmatpush1.msra.mxu0 0.0
        %407 = vmatprep.subr.mxu0 0.0
        %408 = vmatpush1.msra.mxu0 0.0
        %409 = vmatprep.subr.mxu0 0.0
        %410 = vmatpush1.msra.mxu0 0.0
        %411 = vmatprep.subr.mxu0 0.0
        %412 = vmatpush1.msra.mxu0 0.0
        %413 = vmatprep.subr.mxu0 0.0
        %414 = vmatpush1.msra.mxu0 0.0
        %415 = vmatprep.subr.mxu0 0.0
        %416 = vmatpush1.msra.mxu0 0.0
        %417 = vmatprep.mubr.f32.mxu0 0.0
        %418 = vmatmul.mubr.f32.gmra.mrb[0].mxu0 %v351
        %v419 = vpop.f32.mrb[0].mxu0
        %v420 = vadd.f32 %v348, %v419
        %v421 = vpop.f32.mrb[0].mxu0
        %422 = vdwg.mxu0
        %v423 = vmax.f32 %v420, 0.0
        %v424 = vld [vmem:[%s3] sm:$0xff]
        %v425 = vld [vmem:[%s3 + $0x8] sm:$0xff]
        %v426 = vld [vmem:[%s3 + $0x10] sm:$0xff]
        %v427 = vld [vmem:[%s3 + $0x18] sm:$0xff]
        %v428 = vld [vmem:[%s3 + $0x20] sm:$0xff]
        %v429 = vld [vmem:[%s3 + $0x28] sm:$0xff]
        %v430 = vld [vmem:[%s3 + $0x30] sm:$0xff]
        %v431 = vld [vmem:[%s3 + $0x38] sm:$0xff]
        %v432 = vld [vmem:[%s4] sm:$0xff]
        %v433 = vld [vmem:[%s4 + $0x8] sm:$0xff]
        %v434 = vld [vmem:[%s4 + $0x10] sm:$0xff]
        %v435 = vld [vmem:[%s4 + $0x18] sm:$0xff]
        %v436 = vld [vmem:[%s4 + $0x20] sm:$0xff]
        %v437 = vld [vmem:[%s4 + $0x28] sm:$0xff]
        %v438 = vld [vmem:[%s4 + $0x30] sm:$0xff]
        %v439 = vld [vmem:[%s4 + $0x38] sm:$0xff]
        %vm440 = vcmask 31744
        %v442 = vsel %vm440, %v424, 0
        %v445 = vsel %vm440, %v425, 0
        %v448 = vsel %vm440, %v426, 0
        %v451 = vsel %vm440, %v427, 0
        %v454 = vsel %vm440, %v428, 0
        %v457 = vsel %vm440, %v429, 0
        %v460 = vsel %vm440, %v430, 0
        %v463 = vsel %vm440, %v431, 0
        %vm465 = vcmask 1043456
        %v467 = vsel %vm465, %v423, 0
        %469 = vmatprep.subr.mxu0 0.0
        %470 = vmatpush1.msra.mxu0 %v467
        %471 = vmatprep.subr.mxu0 0.0
        %472 = vmatpush1.msra.mxu0 0.0
        %473 = vmatprep.subr.mxu0 0.0
        %474 = vmatpush1.msra.mxu0 0.0
        %475 = vmatprep.subr.mxu0 0.0
        %476 = vmatpush1.msra.mxu0 0.0
        %477 = vmatprep.subr.mxu0 0.0
        %478 = vmatpush1.msra.mxu0 0.0
        %479 = vmatprep.subr.mxu0 0.0
        %480 = vmatpush1.msra.mxu0 0.0
        %481 = vmatprep.subr.mxu0 0.0
        %482 = vmatpush1.msra.mxu0 0.0
        %483 = vmatprep.subr.mxu0 0.0
        %484 = vmatpush1.msra.mxu0 0.0
        %485 = vmatprep.subr.mxu0 0.0
        %486 = vmatpush1.msra.mxu0 0.0
        %487 = vmatprep.subr.mxu0 0.0
        %488 = vmatpush1.msra.mxu0 0.0
        %489 = vmatprep.subr.mxu0 0.0
        %490 = vmatpush1.msra.mxu0 0.0
        %491 = vmatprep.subr.mxu0 0.0
        %492 = vmatpush1.msra.mxu0 0.0
        %493 = vmatprep.subr.mxu0 0.0
        %494 = vmatpush1.msra.mxu0 0.0
        %495 = vmatprep.subr.mxu0 0.0
        %496 = vmatpush1.msra.mxu0 0.0
        %497 = vmatprep.subr.mxu0 0.0
        %498 = vmatpush1.msra.mxu0 0.0
        %499 = vmatprep.subr.mxu0 0.0
        %500 = vmatpush1.msra.mxu0 0.0
        %501 = vmatprep.subr.mxu0 0.0
        %502 = vmatpush1.msra.mxu0 0.0
        %503 = vmatprep.subr.mxu0 0.0
        %504 = vmatpush1.msra.mxu0 0.0
        %505 = vmatprep.subr.mxu0 0.0
        %506 = vmatpush1.msra.mxu0 0.0
        %507 = vmatprep.subr.mxu0 0.0
        %508 = vmatpush1.msra.mxu0 0.0
        %509 = vmatprep.subr.mxu0 0.0
        %510 = vmatpush1.msra.mxu0 0.0
        %511 = vmatprep.subr.mxu0 0.0
        %512 = vmatpush1.msra.mxu0 0.0
        %513 = vmatprep.subr.mxu0 0.0
        %514 = vmatpush1.msra.mxu0 0.0
        %515 = vmatprep.subr.mxu0 0.0
        %516 = vmatpush1.msra.mxu0 0.0
        %517 = vmatprep.subr.mxu0 0.0
        %518 = vmatpush1.msra.mxu0 0.0
        %519 = vmatprep.subr.mxu0 0.0
        %520 = vmatpush1.msra.mxu0 0.0
        %521 = vmatprep.subr.mxu0 0.0
        %522 = vmatpush1.msra.mxu0 0.0
        %523 = vmatprep.subr.mxu0 0.0
        %524 = vmatpush1.msra.mxu0 0.0
        %525 = vmatprep.subr.mxu0 0.0
        %526 = vmatpush1.msra.mxu0 0.0
        %527 = vmatprep.subr.mxu0 0.0
        %528 = vmatpush1.msra.mxu0 0.0
        %529 = vmatprep.subr.mxu0 0.0
        %530 = vmatpush1.msra.mxu0 0.0
        %531 = vmatprep.subr.mxu0 0.0
        %532 = vmatpush1.msra.mxu0 0.0
        %533 = vmatprep.mubr.f32.mxu0 0.0
        %534 = vmatmul.mubr.f32.gmra.mrb[0].mxu0 %v442
        %v535 = vpop.f32.mrb[0].mxu0
        %v536 = vadd.f32 %v432, %v535
        %v537 = vpop.f32.mrb[0].mxu0
        %538 = vmatprep.mubr.f32.mxu0 0.0
        %539 = vmatmul.mubr.f32.gmra.mrb[0].mxu0 %v445
        %v540 = vpop.f32.mrb[0].mxu0
        %v541 = vadd.f32 %v433, %v540
        %v542 = vpop.f32.mrb[0].mxu0
        %543 = vmatprep.mubr.f32.mxu0 0.0
        %544 = vmatmul.mubr.f32.gmra.mrb[0].mxu0 %v448
        %v545 = vpop.f32.mrb[0].mxu0
        %v546 = vadd.f32 %v434, %v545
        %v547 = vpop.f32.mrb[0].mxu0
        %548 = vmatprep.mubr.f32.mxu0 0.0
        %549 = vmatmul.mubr.f32.gmra.mrb[0].mxu0 %v451
        %v550 = vpop.f32.mrb[0].mxu0
        %v551 = vadd.f32 %v435, %v550
        %v552 = vpop.f32.mrb[0].mxu0
        %553 = vmatprep.mubr.f32.mxu0 0.0
        %554 = vmatmul.mubr.f32.gmra.mrb[0].mxu0 %v454
        %v555 = vpop.f32.mrb[0].mxu0
        %v556 = vadd.f32 %v436, %v555
        %v557 = vpop.f32.mrb[0].mxu0
        %558 = vmatprep.mubr.f32.mxu0 0.0
        %559 = vmatmul.mubr.f32.gmra.mrb[0].mxu0 %v457
        %v560 = vpop.f32.mrb[0].mxu0
        %v561 = vadd.f32 %v437, %v560
        %v562 = vpop.f32.mrb[0].mxu0
        %563 = vmatprep.mubr.f32.mxu0 0.0
        %564 = vmatmul.mubr.f32.gmra.mrb[0].mxu0 %v460
        %v565 = vpop.f32.mrb[0].mxu0
        %v566 = vadd.f32 %v438, %v565
        %v567 = vpop.f32.mrb[0].mxu0
        %568 = vmatprep.mubr.f32.mxu0 0.0
        %569 = vmatmul.mubr.f32.gmra.mrb[0].mxu0 %v463
        %v570 = vpop.f32.mrb[0].mxu0
        %v571 = vadd.f32 %v439, %v570
        %v572 = vpop.f32.mrb[0].mxu0
        %573 = vdwg.mxu0
        %v574 = vxor.u32 %v536, 2147483648
        %v575 = vxor.u32 %v541, 2147483648
        %v576 = vxor.u32 %v546, 2147483648
        %v577 = vxor.u32 %v551, 2147483648
        %v578 = vxor.u32 %v556, 2147483648
        %v579 = vxor.u32 %v561, 2147483648
        %v580 = vxor.u32 %v566, 2147483648
        %v581 = vxor.u32 %v571, 2147483648
        %v582 = vmul.f32 %v574, 1.442695
        %v583 = vpow.pop %v582
        %v584 = vmul.f32 %v575, 1.442695
        %v585 = vpow.pop %v584
        %v586 = vmul.f32 %v576, 1.442695
        %v587 = vpow.pop %v586
        %v588 = vmul.f32 %v577, 1.442695
        %v589 = vpow.pop %v588
        %v590 = vmul.f32 %v578, 1.442695
        %v591 = vpow.pop %v590
        %v592 = vmul.f32 %v579, 1.442695
        %v593 = vpow.pop %v592
        %v594 = vmul.f32 %v580, 1.442695
        %v595 = vpow.pop %v594
        %v596 = vmul.f32 %v581, 1.442695
        %v597 = vpow.pop %v596
        %v598 = vadd.f32 %v583, 1.0
        %v599 = vadd.f32 %v585, 1.0
        %v600 = vadd.f32 %v587, 1.0
        %v601 = vadd.f32 %v589, 1.0
        %v602 = vadd.f32 %v591, 1.0
        %v603 = vadd.f32 %v593, 1.0
        %v604 = vadd.f32 %v595, 1.0
        %v605 = vadd.f32 %v597, 1.0
        %v606 = vrcp.pop %v598
        %v607 = vmul.f32 1.0, %v606
        %v608 = vrcp.pop %v599
        %v609 = vmul.f32 1.0, %v608
        %v610 = vrcp.pop %v600
        %v611 = vmul.f32 1.0, %v610
        %v612 = vrcp.pop %v601
        %v613 = vmul.f32 1.0, %v612
        %v614 = vrcp.pop %v602
        %v615 = vmul.f32 1.0, %v614
        %v616 = vrcp.pop %v603
        %v617 = vmul.f32 1.0, %v616
        %v618 = vrcp.pop %v604
        %v619 = vmul.f32 1.0, %v618
        %v620 = vrcp.pop %v605
        %v621 = vmul.f32 1.0, %v620
        %v622 = vld [vmem:[%s5] sm:$0x1]
        %v623 = vld [vmem:[#allocation2] sm:$0x1]
        %625 = vset.pattern.permute.xlu0 0
        %626 = vperm.xlu0 %625, %v623
        %v627 = vpop.permute.xlu0 %626
        %v629 = vlaneseq
        %v630 = vshrl.u32 %v629, 7
        %v631 = vsub.s32 0, %v630
        %v632 = vrot.slane %v627, %v631
        %v634 = vsel %vm349, %v622, 0
        %636 = vmatprep.subr.mxu0 %v300
        %637 = vmatpush1.msra.mxu0 %v299
        %638 = vmatprep.subr.mxu0 %v302
        %639 = vmatpush1.msra.mxu0 %v301
        %640 = vmatprep.subr.mxu0 %v304
        %641 = vmatpush1.msra.mxu0 %v303
        %642 = vmatprep.subr.mxu0 %v306
        %643 = vmatpush1.msra.mxu0 %v305
        %644 = vmatprep.subr.mxu0 %v308
        %645 = vmatpush1.msra.mxu0 %v307
        %646 = vmatprep.subr.mxu0 %v310
        %647 = vmatpush1.msra.mxu0 %v309
        %648 = vmatprep.subr.mxu0 %v312
        %649 = vmatpush1.msra.mxu0 %v311
        %650 = vmatprep.subr.mxu0 %v314
        %651 = vmatpush1.msra.mxu0 %v313
        %652 = vmatprep.subr.mxu0 0.0
        %653 = vmatpush1.msra.mxu0 0.0
        %654 = vmatprep.subr.mxu0 0.0
        %655 = vmatpush1.msra.mxu0 0.0
        %656 = vmatprep.subr.mxu0 0.0
        %657 = vmatpush1.msra.mxu0 0.0
        %658 = vmatprep.subr.mxu0 0.0
        %659 = vmatpush1.msra.mxu0 0.0
        %660 = vmatprep.subr.mxu0 0.0
        %661 = vmatpush1.msra.mxu0 0.0
        %662 = vmatprep.subr.mxu0 0.0
        %663 = vmatpush1.msra.mxu0 0.0
        %664 = vmatprep.subr.mxu0 0.0
        %665 = vmatpush1.msra.mxu0 0.0
        %666 = vmatprep.subr.mxu0 0.0
        %667 = vmatpush1.msra.mxu0 0.0
        %668 = vmatprep.subr.mxu0 0.0
        %669 = vmatpush1.msra.mxu0 0.0
        %670 = vmatprep.subr.mxu0 0.0
        %671 = vmatpush1.msra.mxu0 0.0
        %672 = vmatprep.subr.mxu0 0.0
        %673 = vmatpush1.msra.mxu0 0.0
        %674 = vmatprep.subr.mxu0 0.0
        %675 = vmatpush1.msra.mxu0 0.0
        %676 = vmatprep.subr.mxu0 0.0
        %677 = vmatpush1.msra.mxu0 0.0
        %678 = vmatprep.subr.mxu0 0.0
        %679 = vmatpush1.msra.mxu0 0.0
        %680 = vmatprep.subr.mxu0 0.0
        %681 = vmatpush1.msra.mxu0 0.0
        %682 = vmatprep.subr.mxu0 0.0
        %683 = vmatpush1.msra.mxu0 0.0
        %684 = vmatprep.subr.mxu0 0.0
        %685 = vmatpush1.msra.mxu0 0.0
        %686 = vmatprep.subr.mxu0 0.0
        %687 = vmatpush1.msra.mxu0 0.0
        %688 = vmatprep.subr.mxu0 0.0
        %689 = vmatpush1.msra.mxu0 0.0
        %690 = vmatprep.subr.mxu0 0.0
        %691 = vmatpush1.msra.mxu0 0.0
        %692 = vmatprep.subr.mxu0 0.0
        %693 = vmatpush1.msra.mxu0 0.0
        %694 = vmatprep.subr.mxu0 0.0
        %695 = vmatpush1.msra.mxu0 0.0
        %696 = vmatprep.subr.mxu0 0.0
        %697 = vmatpush1.msra.mxu0 0.0
        %698 = vmatprep.subr.mxu0 0.0
        %699 = vmatpush1.msra.mxu0 0.0
        %700 = vmatprep.mubr.f32.mxu0 0.0
        %701 = vmatmul.mubr.f32.gmra.mrb[0].mxu0 %v634
        %v702 = vpop.f32.mrb[0].mxu0
        %v703 = vadd.f32 %v632, %v702
        %v704 = vpop.f32.mrb[0].mxu0
        %v705 = vadd.f32 %v632, %v704
        %706 = vdwg.mxu0
        %v707 = vxor.u32 %v703, 2147483648
        %v708 = vxor.u32 %v705, 2147483648
        %v709 = vmul.f32 %v707, 1.442695
        %v710 = vpow.pop %v709
        %v711 = vmul.f32 %v708, 1.442695
        %v712 = vpow.pop %v711
        %v713 = vadd.f32 %v710, 1.0
        %v714 = vadd.f32 %v712, 1.0
        %v715 = vrcp.pop %v713
        %v716 = vmul.f32 1.0, %v715
        %v717 = vrcp.pop %v714
        %v718 = vmul.f32 1.0, %v717
        %720 = vset.pattern.permute.xlu0 0
        %721 = vperm.xlu0 %720, %v607
        %v722 = vpop.permute.xlu0 %721
        %725 = vset.pattern.permute.xlu0 0
        %726 = vperm.xlu0 %725, %v609
        %v727 = vpop.permute.xlu0 %726
        %730 = vset.pattern.permute.xlu0 0
        %731 = vperm.xlu0 %730, %v611
        %v732 = vpop.permute.xlu0 %731
        %735 = vset.pattern.permute.xlu0 0
        %736 = vperm.xlu0 %735, %v613
        %v737 = vpop.permute.xlu0 %736
        %740 = vset.pattern.permute.xlu0 0
        %741 = vperm.xlu0 %740, %v615
        %v742 = vpop.permute.xlu0 %741
        %745 = vset.pattern.permute.xlu0 0
        %746 = vperm.xlu0 %745, %v617
        %v747 = vpop.permute.xlu0 %746
        %750 = vset.pattern.permute.xlu0 0
        %751 = vperm.xlu0 %750, %v619
        %v752 = vpop.permute.xlu0 %751
        %755 = vset.pattern.permute.xlu0 0
        %756 = vperm.xlu0 %755, %v621
        %v757 = vpop.permute.xlu0 %756
        %v759 = vlaneseq
        %v760 = vshrl.u32 %v759, 7
        %v761 = vsub.s32 0, %v760
        %v762 = vrot.slane %v716, %v761
        %v763 = vlaneseq
        %v764 = vshrl.u32 %v763, 7
        %v765 = vsub.s32 0, %v764
        %v766 = vrot.slane %v718, %v765
        %v767 = vadd.f32 %v722, %v762
        %v768 = vadd.f32 %v722, %v766
        %v769 = vadd.f32 %v727, %v762
        %v770 = vadd.f32 %v727, %v766
        %v771 = vadd.f32 %v732, %v762
        %v772 = vadd.f32 %v732, %v766
        %v773 = vadd.f32 %v737, %v762
        %v774 = vadd.f32 %v737, %v766
        %v775 = vadd.f32 %v742, %v762
        %v776 = vadd.f32 %v742, %v766
        %v777 = vadd.f32 %v747, %v762
        %v778 = vadd.f32 %v747, %v766
        %v779 = vadd.f32 %v752, %v762
        %v780 = vadd.f32 %v752, %v766
        %v781 = vadd.f32 %v757, %v762
        %v782 = vadd.f32 %v757, %v766
        %v783 = vmul.f32 %v299, %v767
        %v784 = vmul.f32 %v300, %v768
        %v785 = vmul.f32 %v301, %v769
        %v786 = vmul.f32 %v302, %v770
        %v787 = vmul.f32 %v303, %v771
        %v788 = vmul.f32 %v304, %v772
        %v789 = vmul.f32 %v305, %v773
        %v790 = vmul.f32 %v306, %v774
        %v791 = vmul.f32 %v307, %v775
        %v792 = vmul.f32 %v308, %v776
        %v793 = vmul.f32 %v309, %v777
        %v794 = vmul.f32 %v310, %v778
        %v795 = vmul.f32 %v311, %v779
        %v796 = vmul.f32 %v312, %v780
        %v797 = vmul.f32 %v313, %v781
        %v798 = vmul.f32 %v314, %v782
        %799 = vst [vmem:[%s298] sm:$0xff] %v783
        %800 = vst [vmem:[%s298 + $0x8] sm:$0xff] %v784
        %801 = vst [vmem:[%s298 + $0x10] sm:$0xff] %v785
        %802 = vst [vmem:[%s298 + $0x18] sm:$0xff] %v786
        %803 = vst [vmem:[%s298 + $0x20] sm:$0xff] %v787
        %804 = vst [vmem:[%s298 + $0x28] sm:$0xff] %v788
        %805 = vst [vmem:[%s298 + $0x30] sm:$0xff] %v789
        %806 = vst [vmem:[%s298 + $0x38] sm:$0xff] %v790
        %807 = vst [vmem:[%s298 + $0x40] sm:$0xff] %v791
        %808 = vst [vmem:[%s298 + $0x48] sm:$0xff] %v792
        %809 = vst [vmem:[%s298 + $0x50] sm:$0xff] %v793
        %810 = vst [vmem:[%s298 + $0x58] sm:$0xff] %v794
        %811 = vst [vmem:[%s298 + $0x60] sm:$0xff] %v795
        %812 = vst [vmem:[%s298 + $0x68] sm:$0xff] %v796
        %813 = vst [vmem:[%s298 + $0x70] sm:$0xff] %v797
        %814 = vst [vmem:[%s298 + $0x78] sm:$0xff] %v798
        %s815 = sand.u32 %s186, 1
        %s816 = scalar_lea.sflag [#allocation5], %s815
        %s817 = sand.u32 %s186, 1
        %s818 = smul.addr %s817, 128
        %s819 = scalar_lea.vmem [#allocation6], %s818
        // Predicated region
        $region53: #{tpu_custom_call.1} parent=47 // pred_check
          %p820 = pneg %p196
        $region54: #{tpu_custom_call.1} parent=47 // pred_check_branch
          %822 = sbr.rel (%p820) target = $region56
        $region55: #{tpu_custom_call.1} parent=47 // pred_region
          %s824 = ssub.s32 2048, 2048
          %825 = vsyncadd %s816, %s824
          %s826 = smul.addr %s26, 16
          %s827 = smul.addr %s826, 128
          %s828 = scalar_lea.hbm %s7, %s827
          %s829 = sshll.u32 %s819, 4
          %s830 = int_to_ptr.vmem [resolvable:$true] %s829
          %835 = dma.vmem_to_hbm [thread:$0]  %s830, 2048, %s828, %s816, 256, 256, 16
        $region56: #{tpu_custom_call.1} parent=47 // pred_fallthru
          _
      $region48: #{tpu_custom_call.1} parent=5 // pred_fallthru
        _
      %p836 = scmp.le.s32.totalorder 2, %s21
      // Predicated region
      $region57: #{tpu_custom_call.1} parent=5 // pred_check
        %p837 = pneg %p836
      $region58: #{tpu_custom_call.1} parent=5 // pred_check_branch
        %839 = sbr.rel (%p837) target = $region60
      $region59: #{tpu_custom_call.1} parent=5 // pred_region
        %s840 = ssub.s32 %s21, 2
        // Predicated region
        $region61: #{tpu_custom_call.1} parent=59 // pred_check
          %p841 = pneg %p202
        $region62: #{tpu_custom_call.1} parent=59 // pred_check_branch
          %843 = sbr.rel (%p841) target = $region64
        $region63: #{tpu_custom_call.1} parent=59 // pred_region
          %s844 = sand.u32 %s187, 1
          %s845 = scalar_lea.sflag [#allocation5], %s844
          %s846 = sand.u32 %s187, 1
          %s847 = smul.addr %s846, 128
          %s848 = scalar_lea.vmem [#allocation6], %s847
          %849 = dma.done %s845, 2048
        $region64: #{tpu_custom_call.1} parent=59 // pred_fallthru
          _
      $region60: #{tpu_custom_call.1} parent=5 // pred_fallthru
        _
    $region6: #{tpu_custom_call.1} parent=1 // loop_footer
      %s25 = sadd.s32 1, %s21
    $region7: #{tpu_custom_call.1} parent=1 // loop_footer_branch
      %20 = sbr.rel target = $region3
    $region8: #{tpu_custom_call.1} parent=1 // loop_exit
      _
    %850 = vsyncpa [#allocation4], 1
    %s851 = scalar_lea.sflag [#allocation4], 1
    %852 = vsyncpa %s851, 1
    %853 = vsyncpa [#allocation5], 1
    %s854 = scalar_lea.sflag [#allocation5], 1
    %855 = vsyncpa %s854, 1

</llo_original>
